<compile_context>
chip_gen: v6e
topology: v6e:2x2x1
jax: 0.10.0
libtpu: 0.0.40
codegen_flags: <defaults>
</compile_context>

<pallas_src>
import functools
import math

import jax
import jax.numpy as jnp
from jax import lax
from jax.experimental import pallas as pl
from jax.experimental.pallas import tpu as pltpu


def _head_store_group(num_heads, head_dim):
    """Smallest head-group size whose lane width is a multiple of 128 (or all heads)."""
    if num_heads * head_dim <= 128:
        return num_heads
    for g in range(1, num_heads + 1):
        if num_heads % g == 0 and (g * head_dim) % 128 == 0:
            return g
    return num_heads


def mha_kernel(x_ref, wqkv_ref, bqkv_ref, wu_ref, bu_ref, o_ref,
               qkv_ref, attn_ref, *, num_heads, emb_size, seq_len,
               block_b, store_group):
    E, H, T = emb_size, num_heads, seq_len
    d = E // H

    # ---- 1) Fused Q|K|V projection over the flattened (block_b*T, E) slab. ----
    # bf16 x bf16 MXU matmul, f32 accumulation; the 1/sqrt(E) scale is already
    # folded into the Q slice of wqkv / bqkv (done in f32 in the wrapper).
    xb = x_ref[...].astype(jnp.bfloat16)                               # (bT, E)
    qkv = jnp.dot(xb, wqkv_ref[...], preferred_element_type=jnp.float32)
    qkv_ref[...] = (qkv + bqkv_ref[...]).astype(jnp.bfloat16)          # (bT, 3E)

    # ---- 2) Attention core, one batch element at a time. ----
    def attend(b):
        row = b * T
        if block_b > 1 and T % 8 == 0:
            row = pl.multiple_of(row, 8)
        qkv_b = qkv_ref[pl.ds(row, T), :]                              # (T, 3E) bf16
        for g0 in range(0, H, store_group):
            outs = []
            for h in range(g0, g0 + store_group):
                qh = qkv_b[:, h * d:(h + 1) * d]                       # (T, d) pre-scaled
                kh = qkv_b[:, E + h * d:E + (h + 1) * d]               # (T, d)
                vh = qkv_b[:, 2 * E + h * d:2 * E + (h + 1) * d]       # (T, d)

                # energy = qh @ kh^T (contract head_dim of both operands).
                s = lax.dot_general(qh, kh, (((1,), (1,)), ((), ())),
                                    preferred_element_type=jnp.float32)  # (T, T)

                # Numerically stable softmax in f32; normalize AFTER the PV
                # matmul so the divide becomes a (T, d) EUP-reciprocal multiply.
                s_max = jnp.max(s, axis=-1, keepdims=True)
                p = jnp.exp(s - s_max)                                   # (T, T) f32
                denom = jnp.sum(p, axis=-1, keepdims=True)               # (T, 1)

                pv = jnp.dot(p.astype(jnp.bfloat16), vh,
                             preferred_element_type=jnp.float32)         # (T, d)
                pv = pv * pl.reciprocal(denom, approx=True)
                outs.append(pv.astype(jnp.bfloat16))

            # Lane-aligned store of the whole head group into the merged slab.
            slab = outs[0] if len(outs) == 1 else jnp.concatenate(outs, axis=1)
            attn_ref[pl.ds(row, T), g0 * d:(g0 + store_group) * d] = slab

    if block_b == 1:
        attend(0)
    else:
        def body(b, carry):
            attend(b)
            return carry
        lax.fori_loop(0, block_b, body, 0)

    # ---- 3) Unify-heads projection: one large-M, full-K lane-dense matmul. ----
    y = jnp.dot(attn_ref[...], wu_ref[...], preferred_element_type=jnp.float32)
    o_ref[...] = (y + bu_ref[...]).astype(o_ref.dtype)


def _vmem_capacity_bytes():
    try:
        return int(pltpu.get_tpu_info().vmem_capacity_bytes)
    except Exception:
        return 64 << 20  # conservative (valid on every generation incl. v7x)


def _block_vmem_bytes(bb, T, E, x_itemsize):
    io = 2 * 2 * bb * T * E * x_itemsize          # double-buffered x + out tiles
    scratch = bb * T * (4 * E) * 2                # bf16 qkv (3E) + merged-head (E) scratch
    work = 4 * T * T * 4 + (1 << 20)              # live (T,T) score temporaries + slack
    return io + scratch + work


def _pick_block_b(B, T, E, x_itemsize, budget_bytes):
    # Keep >= 2 grid steps when possible (v7x dual TensorCore + DMA pipelining).
    max_bb = B if B < 2 else max(1, B // 2)
    best = None
    for cand in range(1, min(max_bb, 16) + 1):
        if B % cand:
            continue
        if (cand * T) % 8 and cand != B:          # block must stay sublane-tileable
            continue
        if _block_vmem_bytes(cand, T, E, x_itemsize) <= budget_bytes:
            best = cand
    if best is None:
        # TODO(synk): pad T to a multiple of 8 (with key masking) instead of
        # falling back to a single full-batch block for awkward sequence lengths.
        best = 1 if (T % 8 == 0) else B
    return best


def multi_head_attention(x, params, *, num_heads, block_b=None):
    """x: (B, T, E). params: weights (E, E) stored as (in, out), biases (1, E)."""
    B, T, E = x.shape
    assert E % num_heads == 0

    # Fold the 1/sqrt(E) scale into Q in f32, fuse Q|K|V, then cast weights to
    # bf16 for the MXU. Biases stay f32 (added to the f32 accumulator).
    inv_scale = 1.0 / math.sqrt(float(E))
    wqkv = jnp.concatenate(
        [params["wq"] * inv_scale, params["wk"], params["wv"]],
        axis=1).astype(jnp.bfloat16)                                   # (E, 3E)
    bqkv = jnp.concatenate(
        [params["bq"] * inv_scale, params["bk"], params["bv"]],
        axis=1).astype(jnp.float32)                                    # (1, 3E)
    wu = params["wu"].astype(jnp.bfloat16)                             # (E, E)
    bu = params["bu"].astype(jnp.float32)                              # (1, E)

    cap = _vmem_capacity_bytes()
    # Resident weights: bf16, double-buffered by default, plus f32 biases.
    w_bytes = 2 * (E * 3 * E + E * E) * 2 + 2 * (4 * E) * 4

    if block_b is None:
        block_b = _pick_block_b(B, T, E, x.dtype.itemsize,
                                budget_bytes=int(cap * 0.55) - w_bytes)
    assert B % block_b == 0, "block_b must divide B"

    store_group = _head_store_group(num_heads, E // num_heads)

    need = w_bytes + _block_vmem_bytes(block_b, T, E, x.dtype.itemsize) + (4 << 20)
    vmem_bytes = int(max(32 << 20, min(int(cap * 0.8), int(need * 1.3))))

    bt = block_b * T
    x2 = x.reshape(B * T, E)  # flatten batch into M (free layout-wise when T%8==0)

    kernel = functools.partial(
        mha_kernel, num_heads=num_heads, emb_size=E, seq_len=T,
        block_b=block_b, store_group=store_group)

    out2 = pl.pallas_call(
        kernel,
        out_shape=jax.ShapeDtypeStruct((B * T, E), x.dtype),
        grid_spec=pltpu.PrefetchScalarGridSpec(
            num_scalar_prefetch=0,
            grid=(B // block_b,),
            in_specs=[
                pl.BlockSpec((bt, E), lambda i: (i, 0)),        # x (batch-flattened)
                # TODO(synk): single-buffer these grid-invariant weight blocks
                # (pipeline_mode=pl.Buffered(1)) once that path is validated.
                pl.BlockSpec((E, 3 * E), lambda i: (0, 0)),     # fused W_qkv (bf16)
                pl.BlockSpec((1, 3 * E), lambda i: (0, 0)),     # fused b_qkv (f32)
                pl.BlockSpec((E, E), lambda i: (0, 0)),         # W_unify (bf16)
                pl.BlockSpec((1, E), lambda i: (0, 0)),         # b_unify (f32)
            ],
            out_specs=pl.BlockSpec((bt, E), lambda i: (i, 0)),
            scratch_shapes=[
                pltpu.VMEM((bt, 3 * E), jnp.bfloat16),          # QKV slab
                pltpu.VMEM((bt, E), jnp.bfloat16),              # merged head outputs
            ],
        ),
        compiler_params=pltpu.CompilerParams(
            dimension_semantics=("parallel",),
            vmem_limit_bytes=vmem_bytes),
    )(x2, wqkv, bqkv, wu, bu)

    return out2.reshape(B, T, E)


def reference_mha(x, params, *, num_heads):
    """Pure-JAX f32 reference mirroring the PyTorch forward."""
    B, T, E = x.shape
    d = E // num_heads
    q = x @ params["wq"] + params["bq"]
    k = x @ params["wk"] + params["bk"]
    v = x @ params["wv"] + params["bv"]

    def split(z):  # (B, T, E) -> (B, H, T, d)
        return z.reshape(B, T, num_heads, d).transpose(0, 2, 1, 3)

    qh, kh, vh = split(q), split(k), split(v)
    energy = jnp.einsum("bhqd,bhkd->bhqk", qh, kh)
    attn = jax.nn.softmax(energy / math.sqrt(float(E)), axis=-1)
    out = jnp.einsum("bhqk,bhkd->bhqd", attn, vh)
    out = out.transpose(0, 2, 1, 3).reshape(B, T, E)
    return out @ params["wu"] + params["bu"]


if __name__ == "__main__":
    B, T, E, H = 2, 8, 32, 4

    key = jax.random.PRNGKey(0)
    keys = jax.random.split(key, 9)

    lim = 1.0 / math.sqrt(E)
    params = {
        "wq": jax.random.uniform(keys[0], (E, E), jnp.float32, -lim, lim),
        "bq": jax.random.uniform(keys[1], (1, E), jnp.float32, -lim, lim),
        "wk": jax.random.uniform(keys[2], (E, E), jnp.float32, -lim, lim),
        "bk": jax.random.uniform(keys[3], (1, E), jnp.float32, -lim, lim),
        "wv": jax.random.uniform(keys[4], (E, E), jnp.float32, -lim, lim),
        "bv": jax.random.uniform(keys[5], (1, E), jnp.float32, -lim, lim),
        "wu": jax.random.uniform(keys[6], (E, E), jnp.float32, -lim, lim),
        "bu": jax.random.uniform(keys[7], (1, E), jnp.float32, -lim, lim),
    }

    x = jax.random.normal(keys[8], (B, T, E), jnp.float32)

    out = multi_head_attention(x, params, num_heads=H)
    out = jax.block_until_ready(out)

    ref = reference_mha(x, params, num_heads=H)
    assert out.shape == (B, T, E)
    # Tolerance accounts for bf16 MXU operands + approx-reciprocal softmax denom.
    assert jnp.allclose(out, ref, atol=2e-2, rtol=2e-2), "mismatch vs reference"

    print("KERNEL_OK")
</pallas_src>

<mosaic_0001>
module attributes {stable_mosaic.version = 11 : i64} {
  func.func @mha_kernel(%arg0: i32, %arg1: memref<8x32xf32, #tpu.memory_space<vmem>>, %arg2: memref<32x96xbf16, #tpu.memory_space<vmem>>, %arg3: memref<1x96xf32, #tpu.memory_space<vmem>>, %arg4: memref<32x32xbf16, #tpu.memory_space<vmem>>, %arg5: memref<1x32xf32, #tpu.memory_space<vmem>>, %arg6: memref<8x32xf32, #tpu.memory_space<vmem>>, %arg7: memref<8x96xbf16, #tpu.memory_space<vmem>>, %arg8: memref<8x32xbf16, #tpu.memory_space<vmem>>) attributes {dimension_semantics = [#tpu.dimension_semantics<parallel>], iteration_bounds = array<i64: 2>, scalar_prefetch = 0 : i64, scratch_operands = 2 : i64, tpu.core_type = #tpu.core_type<tc>, window_params = [{transform_indices = @transform_0, window_bounds = array<i64: 8, 32>}, {pipeline_mode = #tpu.pipeline_mode<synchronous>, transform_indices = @transform_1, window_bounds = array<i64: 32, 96>}, {pipeline_mode = #tpu.pipeline_mode<synchronous>, transform_indices = @transform_2, window_bounds = array<i64: 1, 96>}, {pipeline_mode = #tpu.pipeline_mode<synchronous>, transform_indices = @transform_3, window_bounds = array<i64: 32, 32>}, {pipeline_mode = #tpu.pipeline_mode<synchronous>, transform_indices = @transform_4, window_bounds = array<i64: 1, 32>}, {transform_indices = @transform_5, window_bounds = array<i64: 8, 32>}]} {
    %c0 = arith.constant 0 : index
    %c0_0 = arith.constant 0 : index
    %0 = vector.load %arg1[%c0, %c0_0] : memref<8x32xf32, #tpu.memory_space<vmem>>, vector<8x32xf32>
    %1 = arith.truncf %0 : vector<8x32xf32> to vector<8x32xbf16>
    %c0_1 = arith.constant 0 : index
    %c0_2 = arith.constant 0 : index
    %2 = vector.load %arg2[%c0_1, %c0_2] : memref<32x96xbf16, #tpu.memory_space<vmem>>, vector<32x96xbf16>
    %cst = arith.constant dense<0.000000e+00> : vector<8x96xf32>
    %3 = tpu.matmul %1, %2, %cst {dimension_numbers = #tpu.dot_dimension_numbers<[1], [0], [0], [1], [0, 0, 1, 1], [], []>} : vector<8x32xbf16>, vector<32x96xbf16>, vector<8x96xf32> -> vector<8x96xf32>
    %c0_3 = arith.constant 0 : index
    %c0_4 = arith.constant 0 : index
    %4 = vector.load %arg3[%c0_3, %c0_4] : memref<1x96xf32, #tpu.memory_space<vmem>>, vector<1x96xf32>
    %5 = vector.broadcast %4 : vector<1x96xf32> to vector<8x96xf32>
    %6 = arith.addf %3, %5 : vector<8x96xf32>
    %7 = arith.truncf %6 : vector<8x96xf32> to vector<8x96xbf16>
    %c0_5 = arith.constant 0 : index
    %c0_6 = arith.constant 0 : index
    %8 = vector.load %arg7[%c0_5, %c0_6] : memref<8x96xbf16, #tpu.memory_space<vmem>>, vector<8x96xbf16>
    tpu.vector_store %arg7[%c0_5, %c0_6], %7 {strides = array<i32>} : memref<8x96xbf16, #tpu.memory_space<vmem>>, vector<8x96xbf16>,
    %c0_7 = arith.constant 0 : index
    %c0_8 = arith.constant 0 : index
    %9 = vector.load %arg7[%c0_7, %c0_8] : memref<8x96xbf16, #tpu.memory_space<vmem>>, vector<8x96xbf16>
    %10 = vector.extract_strided_slice %9 {offsets = [0, 0], sizes = [8, 8], strides = [1, 1]} : vector<8x96xbf16> to vector<8x8xbf16>
    %11 = vector.extract_strided_slice %9 {offsets = [0, 32], sizes = [8, 8], strides = [1, 1]} : vector<8x96xbf16> to vector<8x8xbf16>
    %12 = vector.extract_strided_slice %9 {offsets = [0, 64], sizes = [8, 8], strides = [1, 1]} : vector<8x96xbf16> to vector<8x8xbf16>
    %cst_9 = arith.constant dense<0.000000e+00> : vector<8x8xf32>
    %13 = tpu.matmul %10, %11, %cst_9 {dimension_numbers = #tpu.dot_dimension_numbers<[1], [1], [0], [0], [0, 0, 1, 0], [], []>} : vector<8x8xbf16>, vector<8x8xbf16>, vector<8x8xf32> -> vector<8x8xf32>
    %cst_10 = arith.constant dense<0xFF800000> : vector<8xf32>
    %14 = vector.multi_reduction <maximumf>, %13, %cst_10 [1] : vector<8x8xf32> to vector<8xf32>
    %15 = vector.shape_cast %14 : vector<8xf32> to vector<8x1xf32>
    %16 = vector.broadcast %15 : vector<8x1xf32> to vector<8x8xf32>
    %17 = arith.subf %13, %16 : vector<8x8xf32>
    %18 = math.exp %17 : vector<8x8xf32>
    %cst_11 = arith.constant dense<0.000000e+00> : vector<8xf32>
    %19 = vector.multi_reduction <add>, %18, %cst_11 [1] : vector<8x8xf32> to vector<8xf32>
    %20 = vector.shape_cast %19 : vector<8xf32> to vector<8x1xf32>
    %21 = arith.truncf %18 : vector<8x8xf32> to vector<8x8xbf16>
    %cst_12 = arith.constant dense<0.000000e+00> : vector<8x8xf32>
    %22 = tpu.matmul %21, %12, %cst_12 {dimension_numbers = #tpu.dot_dimension_numbers<[1], [0], [0], [1], [0, 0, 1, 1], [], []>} : vector<8x8xbf16>, vector<8x8xbf16>, vector<8x8xf32> -> vector<8x8xf32>
    %23 = tpu.reciprocal %20 {approx = true} : vector<8x1xf32> -> vector<8x1xf32>
    %24 = vector.broadcast %23 : vector<8x1xf32> to vector<8x8xf32>
    %25 = arith.mulf %22, %24 : vector<8x8xf32>
    %26 = arith.truncf %25 : vector<8x8xf32> to vector<8x8xbf16>
    %27 = vector.extract_strided_slice %9 {offsets = [0, 8], sizes = [8, 8], strides = [1, 1]} : vector<8x96xbf16> to vector<8x8xbf16>
    %28 = vector.extract_strided_slice %9 {offsets = [0, 40], sizes = [8, 8], strides = [1, 1]} : vector<8x96xbf16> to vector<8x8xbf16>
    %29 = vector.extract_strided_slice %9 {offsets = [0, 72], sizes = [8, 8], strides = [1, 1]} : vector<8x96xbf16> to vector<8x8xbf16>
    %cst_13 = arith.constant dense<0.000000e+00> : vector<8x8xf32>
    %30 = tpu.matmul %27, %28, %cst_13 {dimension_numbers = #tpu.dot_dimension_numbers<[1], [1], [0], [0], [0, 0, 1, 0], [], []>} : vector<8x8xbf16>, vector<8x8xbf16>, vector<8x8xf32> -> vector<8x8xf32>
    %cst_14 = arith.constant dense<0xFF800000> : vector<8xf32>
    %31 = vector.multi_reduction <maximumf>, %30, %cst_14 [1] : vector<8x8xf32> to vector<8xf32>
    %32 = vector.shape_cast %31 : vector<8xf32> to vector<8x1xf32>
    %33 = vector.broadcast %32 : vector<8x1xf32> to vector<8x8xf32>
    %34 = arith.subf %30, %33 : vector<8x8xf32>
    %35 = math.exp %34 : vector<8x8xf32>
    %cst_15 = arith.constant dense<0.000000e+00> : vector<8xf32>
    %36 = vector.multi_reduction <add>, %35, %cst_15 [1] : vector<8x8xf32> to vector<8xf32>
    %37 = vector.shape_cast %36 : vector<8xf32> to vector<8x1xf32>
    %38 = arith.truncf %35 : vector<8x8xf32> to vector<8x8xbf16>
    %cst_16 = arith.constant dense<0.000000e+00> : vector<8x8xf32>
    %39 = tpu.matmul %38, %29, %cst_16 {dimension_numbers = #tpu.dot_dimension_numbers<[1], [0], [0], [1], [0, 0, 1, 1], [], []>} : vector<8x8xbf16>, vector<8x8xbf16>, vector<8x8xf32> -> vector<8x8xf32>
    %40 = tpu.reciprocal %37 {approx = true} : vector<8x1xf32> -> vector<8x1xf32>
    %41 = vector.broadcast %40 : vector<8x1xf32> to vector<8x8xf32>
    %42 = arith.mulf %39, %41 : vector<8x8xf32>
    %43 = arith.truncf %42 : vector<8x8xf32> to vector<8x8xbf16>
    %44 = vector.extract_strided_slice %9 {offsets = [0, 16], sizes = [8, 8], strides = [1, 1]} : vector<8x96xbf16> to vector<8x8xbf16>
    %45 = vector.extract_strided_slice %9 {offsets = [0, 48], sizes = [8, 8], strides = [1, 1]} : vector<8x96xbf16> to vector<8x8xbf16>
    %46 = vector.extract_strided_slice %9 {offsets = [0, 80], sizes = [8, 8], strides = [1, 1]} : vector<8x96xbf16> to vector<8x8xbf16>
    %cst_17 = arith.constant dense<0.000000e+00> : vector<8x8xf32>
    %47 = tpu.matmul %44, %45, %cst_17 {dimension_numbers = #tpu.dot_dimension_numbers<[1], [1], [0], [0], [0, 0, 1, 0], [], []>} : vector<8x8xbf16>, vector<8x8xbf16>, vector<8x8xf32> -> vector<8x8xf32>
    %cst_18 = arith.constant dense<0xFF800000> : vector<8xf32>
    %48 = vector.multi_reduction <maximumf>, %47, %cst_18 [1] : vector<8x8xf32> to vector<8xf32>
    %49 = vector.shape_cast %48 : vector<8xf32> to vector<8x1xf32>
    %50 = vector.broadcast %49 : vector<8x1xf32> to vector<8x8xf32>
    %51 = arith.subf %47, %50 : vector<8x8xf32>
    %52 = math.exp %51 : vector<8x8xf32>
    %cst_19 = arith.constant dense<0.000000e+00> : vector<8xf32>
    %53 = vector.multi_reduction <add>, %52, %cst_19 [1] : vector<8x8xf32> to vector<8xf32>
    %54 = vector.shape_cast %53 : vector<8xf32> to vector<8x1xf32>
    %55 = arith.truncf %52 : vector<8x8xf32> to vector<8x8xbf16>
    %cst_20 = arith.constant dense<0.000000e+00> : vector<8x8xf32>
    %56 = tpu.matmul %55, %46, %cst_20 {dimension_numbers = #tpu.dot_dimension_numbers<[1], [0], [0], [1], [0, 0, 1, 1], [], []>} : vector<8x8xbf16>, vector<8x8xbf16>, vector<8x8xf32> -> vector<8x8xf32>
    %57 = tpu.reciprocal %54 {approx = true} : vector<8x1xf32> -> vector<8x1xf32>
    %58 = vector.broadcast %57 : vector<8x1xf32> to vector<8x8xf32>
    %59 = arith.mulf %56, %58 : vector<8x8xf32>
    %60 = arith.truncf %59 : vector<8x8xf32> to vector<8x8xbf16>
    %61 = vector.extract_strided_slice %9 {offsets = [0, 24], sizes = [8, 8], strides = [1, 1]} : vector<8x96xbf16> to vector<8x8xbf16>
    %62 = vector.extract_strided_slice %9 {offsets = [0, 56], sizes = [8, 8], strides = [1, 1]} : vector<8x96xbf16> to vector<8x8xbf16>
    %63 = vector.extract_strided_slice %9 {offsets = [0, 88], sizes = [8, 8], strides = [1, 1]} : vector<8x96xbf16> to vector<8x8xbf16>
    %cst_21 = arith.constant dense<0.000000e+00> : vector<8x8xf32>
    %64 = tpu.matmul %61, %62, %cst_21 {dimension_numbers = #tpu.dot_dimension_numbers<[1], [1], [0], [0], [0, 0, 1, 0], [], []>} : vector<8x8xbf16>, vector<8x8xbf16>, vector<8x8xf32> -> vector<8x8xf32>
    %cst_22 = arith.constant dense<0xFF800000> : vector<8xf32>
    %65 = vector.multi_reduction <maximumf>, %64, %cst_22 [1] : vector<8x8xf32> to vector<8xf32>
    %66 = vector.shape_cast %65 : vector<8xf32> to vector<8x1xf32>
    %67 = vector.broadcast %66 : vector<8x1xf32> to vector<8x8xf32>
    %68 = arith.subf %64, %67 : vector<8x8xf32>
    %69 = math.exp %68 : vector<8x8xf32>
    %cst_23 = arith.constant dense<0.000000e+00> : vector<8xf32>
    %70 = vector.multi_reduction <add>, %69, %cst_23 [1] : vector<8x8xf32> to vector<8xf32>
    %71 = vector.shape_cast %70 : vector<8xf32> to vector<8x1xf32>
    %72 = arith.truncf %69 : vector<8x8xf32> to vector<8x8xbf16>
    %cst_24 = arith.constant dense<0.000000e+00> : vector<8x8xf32>
    %73 = tpu.matmul %72, %63, %cst_24 {dimension_numbers = #tpu.dot_dimension_numbers<[1], [0], [0], [1], [0, 0, 1, 1], [], []>} : vector<8x8xbf16>, vector<8x8xbf16>, vector<8x8xf32> -> vector<8x8xf32>
    %74 = tpu.reciprocal %71 {approx = true} : vector<8x1xf32> -> vector<8x1xf32>
    %75 = vector.broadcast %74 : vector<8x1xf32> to vector<8x8xf32>
    %76 = arith.mulf %73, %75 : vector<8x8xf32>
    %77 = arith.truncf %76 : vector<8x8xf32> to vector<8x8xbf16>
    %78 = tpu.concatenate %26, %43, %60, %77 in 1 : vector<8x8xbf16>, vector<8x8xbf16>, vector<8x8xbf16>, vector<8x8xbf16> -> vector<8x32xbf16>
    %c0_25 = arith.constant 0 : index
    %c0_26 = arith.constant 0 : index
    %79 = vector.load %arg8[%c0_25, %c0_26] : memref<8x32xbf16, #tpu.memory_space<vmem>>, vector<8x32xbf16>
    tpu.vector_store %arg8[%c0_25, %c0_26], %78 {strides = array<i32>} : memref<8x32xbf16, #tpu.memory_space<vmem>>, vector<8x32xbf16>,
    %c0_27 = arith.constant 0 : index
    %c0_28 = arith.constant 0 : index
    %80 = vector.load %arg8[%c0_27, %c0_28] : memref<8x32xbf16, #tpu.memory_space<vmem>>, vector<8x32xbf16>
    %c0_29 = arith.constant 0 : index
    %c0_30 = arith.constant 0 : index
    %81 = vector.load %arg4[%c0_29, %c0_30] : memref<32x32xbf16, #tpu.memory_space<vmem>>, vector<32x32xbf16>
    %cst_31 = arith.constant dense<0.000000e+00> : vector<8x32xf32>
    %82 = tpu.matmul %80, %81, %cst_31 {dimension_numbers = #tpu.dot_dimension_numbers<[1], [0], [0], [1], [0, 0, 1, 1], [], []>} : vector<8x32xbf16>, vector<32x32xbf16>, vector<8x32xf32> -> vector<8x32xf32>
    %c0_32 = arith.constant 0 : index
    %c0_33 = arith.constant 0 : index
    %83 = vector.load %arg5[%c0_32, %c0_33] : memref<1x32xf32, #tpu.memory_space<vmem>>, vector<1x32xf32>
    %84 = vector.broadcast %83 : vector<1x32xf32> to vector<8x32xf32>
    %85 = arith.addf %82, %84 : vector<8x32xf32>
    %c0_34 = arith.constant 0 : index
    %c0_35 = arith.constant 0 : index
    %86 = vector.load %arg6[%c0_34, %c0_35] : memref<8x32xf32, #tpu.memory_space<vmem>>, vector<8x32xf32>
    tpu.vector_store %arg6[%c0_34, %c0_35], %85 {strides = array<i32>} : memref<8x32xf32, #tpu.memory_space<vmem>>, vector<8x32xf32>,
    return
  }
  func.func @transform_0(%arg0: i32) -> (i32, i32) {
    %c0_i32 = arith.constant 0 : i32
    %c0_i32_0 = arith.constant 0 : i32
    return %arg0, %c0_i32 : i32, i32
  }
  func.func @transform_1(%arg0: i32) -> (i32, i32) {
    %c0_i32 = arith.constant 0 : i32
    %c0_i32_0 = arith.constant 0 : i32
    %c0_i32_1 = arith.constant 0 : i32
    return %c0_i32, %c0_i32_0 : i32, i32
  }
  func.func @transform_2(%arg0: i32) -> (i32, i32) {
    %c0_i32 = arith.constant 0 : i32
    %c0_i32_0 = arith.constant 0 : i32
    %c0_i32_1 = arith.constant 0 : i32
    return %c0_i32, %c0_i32_0 : i32, i32
  }
  func.func @transform_3(%arg0: i32) -> (i32, i32) {
    %c0_i32 = arith.constant 0 : i32
    %c0_i32_0 = arith.constant 0 : i32
    %c0_i32_1 = arith.constant 0 : i32
    return %c0_i32, %c0_i32_0 : i32, i32
  }
  func.func @transform_4(%arg0: i32) -> (i32, i32) {
    %c0_i32 = arith.constant 0 : i32
    %c0_i32_0 = arith.constant 0 : i32
    %c0_i32_1 = arith.constant 0 : i32
    return %c0_i32, %c0_i32_0 : i32, i32
  }
  func.func @transform_5(%arg0: i32) -> (i32, i32) {
    %c0_i32 = arith.constant 0 : i32
    %c0_i32_0 = arith.constant 0 : i32
    return %arg0, %c0_i32 : i32, i32
  }
}

</mosaic_0001>

<llo_original>
// kernel: tpu_custom_call.1
$region0: #{tpu_custom_call.1}
  #allocation0 [shape = 'u32[]', space=smem, size = 0x4, offset = 0x4, fixed_abs, tag = 'smem constant byte address 0x4 - core index']
  #allocation1 [shape = 'u32[144,128]{1,0:T(1,128)}', space=vmem, size = 0x12000, scoped, tag = 'internal scratch']
  #allocation2 [shape = 'bf16[8,96]{1,0:T(8,128)(2,1)}', space=vmem, size = 0x800, scoped, tag = 'scratch operand']
  #allocation3 [shape = 'bf16[8,32]{1,0:T(8,128)(2,1)}', space=vmem, size = 0x800, scoped, tag = 'scratch operand']
  %s0 = inlined_call_operand.hbm [shape: f32[16,32], index: 0, kind: input, shape index: {}]
  %s1 = inlined_call_operand.hbm [shape: bf16[32,96], index: 1, kind: input, shape index: {}]
  %s2 = inlined_call_operand.vmem [shape: f32[1,96], index: 2, kind: input, shape index: {}]
  %s3 = inlined_call_operand.hbm [shape: bf16[32,32], index: 3, kind: input, shape index: {}]
  %s4 = inlined_call_operand.vmem [shape: f32[1,32], index: 4, kind: input, shape index: {}]
  %s5 = inlined_call_operand.hbm [shape: f32[16,32], index: 5, kind: output, shape index: {}]
  %s6 = sld [smem:[#allocation0]]
  $region65: #{tpu_custom_call.1} parent=0
    _
  %s8 = ssub.s32 1, %s6
  %s9 = scalar_select 0, %s8, %s6
  $region1: #{tpu_custom_call.1} parent=0
    #allocation4 [shape = 'u8[8192]{0}', space=vmem, size = 0x2000, scoped, tag = 'input window, operand 0']
    #allocation5 [shape = 's32[2]{0}', space=sflag, size = 0x8, scoped, tag = 'scoped memory for tpu_custom_call.1']
    #allocation6 [shape = 's32[2]{0}', space=sflag, size = 0x8, scoped, tag = 'scoped memory for tpu_custom_call.1']
    #allocation7 [shape = 'u8[8192]{0}', space=vmem, size = 0x2000, scoped, tag = 'input window, operand 1, single buffered']
    #allocation8 [shape = 's32[1]{0}', space=sflag, size = 0x4, scoped, tag = 'scoped memory for tpu_custom_call.1']
    #allocation9 [shape = 'u8[8192]{0}', space=vmem, size = 0x2000, scoped, tag = 'input window, operand 3, single buffered']
    #allocation10 [shape = 'u8[8192]{0}', space=vmem, size = 0x2000, scoped, tag = 'output window, operand 0']
    %10 = vsyncpa [#allocation5], 0
    %s11 = scalar_lea.sflag [#allocation5], 1
    %12 = vsyncpa %s11, 0
    %13 = vsyncpa [#allocation8], 0
    %14 = vsyncpa [#allocation6], 0
    %s15 = scalar_lea.sflag [#allocation6], 1
    %16 = vsyncpa %s15, 0
    loop: start=0, step=1, limit=4
    $region2: #{tpu_custom_call.1} parent=1 // loop_pre_header
      _
    $region3: #{tpu_custom_call.1} parent=1 // loop_header
      %s18 = sphi 0, %s22
      %p19 = scmp.ge.s32.totalorder %s18, 4
      %s28 = sphi 0, %s30
      %s31 = sphi 0, %s28
      %s32 = sphi 0, %s31
      %s48 = sphi 0, %s32
      %s52 = sphi 0, %s52
      %s54 = sphi 0, %s52
      %s55 = sphi 0, %s54
      %s69 = sphi 0, %s55
      %s73 = sphi 0, %s73
      %s75 = sphi 0, %s73
      %s76 = sphi 0, %s75
      %s90 = sphi 0, %s76
      %s94 = sphi 0, %s94
      %s96 = sphi 0, %s94
      %s97 = sphi 0, %s96
      %s111 = sphi 0, %s97
      %s115 = sphi 0, %s115
      %s117 = sphi 0, %s115
      %s118 = sphi 0, %s117
      %s132 = sphi 0, %s118
      %s138 = sphi 0, %s140
      %s141 = sphi 0, %s138
      %s142 = sphi 0, %s141
      %s158 = sphi 0, %s142
    $region4: #{tpu_custom_call.1} parent=1 // loop_header_branch
      %21 = sbr.rel (%p19) target = $region8
    $region5: #{tpu_custom_call.1} parent=1 // loop_body
      %s23 = ssub.s32 %s18, 1
      %s24 = ssub.s32 %s18, 2
      %s25 = sadd.s32 %s18, 1
      %s26 = ssub.s32 %s18, %s25
      %p27 = scmp.eq.s32.totalorder %s26, 0
      %s29 = sadd.s32 %s28, 1
      %s30 = scalar_select %p27, %s28, %s29
      %p33 = pneg %p27
      %p34 = scmp.eq.s32.totalorder %s18, 1
      %p35 = por %p33, %p34
      %p36 = scmp.ne.s32.totalorder %s28, %s31
      %p37 = scmp.eq.s32.totalorder %s18, 0
      %p38 = por %p36, %p37
      %p39 = scmp.ne.s32.totalorder %s28, %s31
      %p40 = scmp.eq.s32.totalorder %s23, 1
      %p41 = por %p39, %p40
      %p42 = scmp.ne.s32.totalorder %s31, %s32
      %p43 = scmp.eq.s32.totalorder %s23, 0
      %p44 = por %p42, %p43
      %p45 = scmp.ne.s32.totalorder %s31, %s32
      %p46 = scmp.eq.s32.totalorder %s24, 1
      %p47 = por %p45, %p46
      %p49 = scmp.ne.s32.totalorder %s32, %s48
      %p50 = scmp.eq.s32.totalorder %s24, 0
      %p51 = por %p49, %p50
      %s53 = sadd.s32 %s52, 1
      %p56 = scmp.eq.s32.totalorder %s18, 1
      %p57 = scmp.ne.s32.totalorder %s52, %s54
      %p58 = scmp.eq.s32.totalorder %s18, 0
      %p59 = por %p57, %p58
      %p60 = scmp.ne.s32.totalorder %s52, %s54
      %p61 = scmp.eq.s32.totalorder %s23, 1
      %p62 = por %p60, %p61
      %p63 = scmp.ne.s32.totalorder %s54, %s55
      %p64 = scmp.eq.s32.totalorder %s23, 0
      %p65 = por %p63, %p64
      %p66 = scmp.ne.s32.totalorder %s54, %s55
      %p67 = scmp.eq.s32.totalorder %s24, 1
      %p68 = por %p66, %p67
      %p70 = scmp.ne.s32.totalorder %s55, %s69
      %p71 = scmp.eq.s32.totalorder %s24, 0
      %p72 = por %p70, %p71
      %s74 = sadd.s32 %s73, 1
      %p77 = scmp.eq.s32.totalorder %s18, 1
      %p78 = scmp.ne.s32.totalorder %s73, %s75
      %p79 = scmp.eq.s32.totalorder %s18, 0
      %p80 = por %p78, %p79
      %p81 = scmp.ne.s32.totalorder %s73, %s75
      %p82 = scmp.eq.s32.totalorder %s23, 1
      %p83 = por %p81, %p82
      %p84 = scmp.ne.s32.totalorder %s75, %s76
      %p85 = scmp.eq.s32.totalorder %s23, 0
      %p86 = por %p84, %p85
      %p87 = scmp.ne.s32.totalorder %s75, %s76
      %p88 = scmp.eq.s32.totalorder %s24, 1
      %p89 = por %p87, %p88
      %p91 = scmp.ne.s32.totalorder %s76, %s90
      %p92 = scmp.eq.s32.totalorder %s24, 0
      %p93 = por %p91, %p92
      %s95 = sadd.s32 %s94, 1
      %p98 = scmp.eq.s32.totalorder %s18, 1
      %p99 = scmp.ne.s32.totalorder %s94, %s96
      %p100 = scmp.eq.s32.totalorder %s18, 0
      %p101 = por %p99, %p100
      %p102 = scmp.ne.s32.totalorder %s94, %s96
      %p103 = scmp.eq.s32.totalorder %s23, 1
      %p104 = por %p102, %p103
      %p105 = scmp.ne.s32.totalorder %s96, %s97
      %p106 = scmp.eq.s32.totalorder %s23, 0
      %p107 = por %p105, %p106
      %p108 = scmp.ne.s32.totalorder %s96, %s97
      %p109 = scmp.eq.s32.totalorder %s24, 1
      %p110 = por %p108, %p109
      %p112 = scmp.ne.s32.totalorder %s97, %s111
      %p113 = scmp.eq.s32.totalorder %s24, 0
      %p114 = por %p112, %p113
      %s116 = sadd.s32 %s115, 1
      %p119 = scmp.eq.s32.totalorder %s18, 1
      %p120 = scmp.ne.s32.totalorder %s115, %s117
      %p121 = scmp.eq.s32.totalorder %s18, 0
      %p122 = por %p120, %p121
      %p123 = scmp.ne.s32.totalorder %s115, %s117
      %p124 = scmp.eq.s32.totalorder %s23, 1
      %p125 = por %p123, %p124
      %p126 = scmp.ne.s32.totalorder %s117, %s118
      %p127 = scmp.eq.s32.totalorder %s23, 0
      %p128 = por %p126, %p127
      %p129 = scmp.ne.s32.totalorder %s117, %s118
      %p130 = scmp.eq.s32.totalorder %s24, 1
      %p131 = por %p129, %p130
      %p133 = scmp.ne.s32.totalorder %s118, %s132
      %p134 = scmp.eq.s32.totalorder %s24, 0
      %p135 = por %p133, %p134
      %s136 = ssub.s32 %s18, %s25
      %p137 = scmp.eq.s32.totalorder %s136, 0
      %s139 = sadd.s32 %s138, 1
      %s140 = scalar_select %p137, %s138, %s139
      %p143 = pneg %p137
      %p144 = scmp.eq.s32.totalorder %s18, 1
      %p145 = por %p143, %p144
      %p146 = scmp.ne.s32.totalorder %s138, %s141
      %p147 = scmp.eq.s32.totalorder %s18, 0
      %p148 = por %p146, %p147
      %p149 = scmp.ne.s32.totalorder %s138, %s141
      %p150 = scmp.eq.s32.totalorder %s23, 1
      %p151 = por %p149, %p150
      %p152 = scmp.ne.s32.totalorder %s141, %s142
      %p153 = scmp.eq.s32.totalorder %s23, 0
      %p154 = por %p152, %p153
      %p155 = scmp.ne.s32.totalorder %s141, %s142
      %p156 = scmp.eq.s32.totalorder %s24, 1
      %p157 = por %p155, %p156
      %p159 = scmp.ne.s32.totalorder %s142, %s158
      %p160 = scmp.eq.s32.totalorder %s24, 0
      %p161 = por %p159, %p160
      %p162 = scmp.le.s32.totalorder 1, %s18
      %p163 = scmp.lt.s32.totalorder %s18, 3
      %p164 = pnand %p162, %p163
      %p165 = pneg %p164
      // Predicated region
      $region9: #{tpu_custom_call.1} parent=5 // pred_check
        _
      $region10: #{tpu_custom_call.1} parent=5 // pred_check_branch
        %167 = sbr.rel (%p164) target = $region12
      $region11: #{tpu_custom_call.1} parent=5 // pred_region
        %s168 = ssub.s32 %s18, 1
        // Predicated region
        $region13: #{tpu_custom_call.1} parent=11 // pred_check
          %p169 = pneg %p65
        $region14: #{tpu_custom_call.1} parent=11 // pred_check_branch
          %171 = sbr.rel (%p169) target = $region16
        $region15: #{tpu_custom_call.1} parent=11 // pred_region
          %s173 = ssub.s32 256, 256
          %174 = vsyncadd [#allocation8], %s173
          %s175 = sshll.u32 [#allocation7], 4
          %s176 = int_to_ptr.vmem [resolvable:$true] %s175
          %181 = dma.hbm_to_vmem [thread:$0]  %s1, 256, %s176, [#allocation8], 64, 64, 4
        $region16: #{tpu_custom_call.1} parent=11 // pred_fallthru
          _
        // Predicated region
        $region17: #{tpu_custom_call.1} parent=11 // pred_check
          %p182 = pneg %p86
        $region18: #{tpu_custom_call.1} parent=11 // pred_check_branch
          %184 = sbr.rel (%p182) target = $region20
        $region19: #{tpu_custom_call.1} parent=11 // pred_region
          _
        $region20: #{tpu_custom_call.1} parent=11 // pred_fallthru
          _
        // Predicated region
        $region21: #{tpu_custom_call.1} parent=11 // pred_check
          %p185 = pneg %p107
        $region22: #{tpu_custom_call.1} parent=11 // pred_check_branch
          %187 = sbr.rel (%p185) target = $region24
        $region23: #{tpu_custom_call.1} parent=11 // pred_region
          %s189 = ssub.s32 256, 256
          %190 = vsyncadd [#allocation8], %s189
          %s191 = sshll.u32 [#allocation9], 4
          %s192 = int_to_ptr.vmem [resolvable:$true] %s191
          %197 = dma.hbm_to_vmem [thread:$0]  %s3, 256, %s192, [#allocation8], 64, 64, 4
        $region24: #{tpu_custom_call.1} parent=11 // pred_fallthru
          _
        // Predicated region
        $region25: #{tpu_custom_call.1} parent=11 // pred_check
          %p198 = pneg %p128
        $region26: #{tpu_custom_call.1} parent=11 // pred_check_branch
          %200 = sbr.rel (%p198) target = $region28
        $region27: #{tpu_custom_call.1} parent=11 // pred_region
          _
        $region28: #{tpu_custom_call.1} parent=11 // pred_fallthru
          _
      $region12: #{tpu_custom_call.1} parent=5 // pred_fallthru
        _
      %p201 = scmp.lt.s32.totalorder %s18, 2
      // Predicated region
      $region29: #{tpu_custom_call.1} parent=5 // pred_check
        %p202 = pneg %p201
      $region30: #{tpu_custom_call.1} parent=5 // pred_check_branch
        %204 = sbr.rel (%p202) target = $region32
      $region31: #{tpu_custom_call.1} parent=5 // pred_region
        // Predicated region
        $region33: #{tpu_custom_call.1} parent=31 // pred_check
          %p205 = pneg %p38
        $region34: #{tpu_custom_call.1} parent=31 // pred_check_branch
          %207 = sbr.rel (%p205) target = $region36
        $region35: #{tpu_custom_call.1} parent=31 // pred_region
          %s208 = sand.u32 %s28, 1
          %s209 = scalar_lea.sflag [#allocation5], %s208
          %s210 = sand.u32 %s28, 1
          %s211 = smul.addr %s210, 8
          %s212 = scalar_lea.vmem [#allocation4], %s211
          %s214 = ssub.s32 128, 128
          %215 = vsyncadd %s209, %s214
          %s216 = smul.addr %s18, 128
          %s217 = scalar_lea.hbm %s0, %s216
          %s219 = sshll.u32 %s212, 4
          %s220 = int_to_ptr.vmem [resolvable:$true] %s219
          %222 = dma.hbm_to_vmem [thread:$0]  %s217, 128, %s220, %s209
        $region36: #{tpu_custom_call.1} parent=31 // pred_fallthru
          _
      $region32: #{tpu_custom_call.1} parent=5 // pred_fallthru
        _
      %p223 = scmp.le.s32.totalorder 1, %s18
      %p224 = scmp.lt.s32.totalorder %s18, 3
      %p225 = pnand %p223, %p224
      %p226 = pneg %p225
      // Predicated region
      $region37: #{tpu_custom_call.1} parent=5 // pred_check
        _
      $region38: #{tpu_custom_call.1} parent=5 // pred_check_branch
        %228 = sbr.rel (%p225) target = $region40
      $region39: #{tpu_custom_call.1} parent=5 // pred_region
        %s229 = ssub.s32 %s18, 1
        %s230 = sand.u32 %s31, 1
        %s231 = scalar_lea.sflag [#allocation5], %s230
        %s232 = sand.u32 %s31, 1
        %s233 = smul.addr %s232, 8
        %s234 = scalar_lea.vmem [#allocation4], %s233
        // Predicated region
        $region41: #{tpu_custom_call.1} parent=39 // pred_check
          %p235 = pneg %p44
        $region42: #{tpu_custom_call.1} parent=39 // pred_check_branch
          %237 = sbr.rel (%p235) target = $region44
        $region43: #{tpu_custom_call.1} parent=39 // pred_region
          %238 = dma.done %s231, 128
        $region44: #{tpu_custom_call.1} parent=39 // pred_fallthru
          _
        // Predicated region
        $region45: #{tpu_custom_call.1} parent=39 // pred_check
          %p239 = pneg %p65
        $region46: #{tpu_custom_call.1} parent=39 // pred_check_branch
          %241 = sbr.rel (%p239) target = $region48
        $region47: #{tpu_custom_call.1} parent=39 // pred_region
          %242 = dma.done [#allocation8], 256
        $region48: #{tpu_custom_call.1} parent=39 // pred_fallthru
          _
        // Predicated region
        $region49: #{tpu_custom_call.1} parent=39 // pred_check
          %p243 = pneg %p107
        $region50: #{tpu_custom_call.1} parent=39 // pred_check_branch
          %245 = sbr.rel (%p243) target = $region52
        $region51: #{tpu_custom_call.1} parent=39 // pred_region
          %246 = dma.done [#allocation8], 256
        $region52: #{tpu_custom_call.1} parent=39 // pred_fallthru
          _
        %s247 = sand.u32 %s31, 1
        %s248 = scalar_lea.sflag [#allocation5], %s247
        %s249 = sand.u32 %s31, 1
        %s250 = smul.addr %s249, 8
        %s251 = scalar_lea.vmem [#allocation4], %s250
        %p252 = pneg %p44
        %p253 = pneg %p41
        %p254 = pneg %p65
        %p255 = pneg %p62
        %p256 = pneg %p86
        %p257 = pneg %p83
        %p258 = pneg %p107
        %p259 = pneg %p104
        %p260 = pneg %p128
        %p261 = pneg %p125
        %p262 = pneg %p154
        %p263 = pneg %p151
        %s264 = sand.u32 %s141, 1
        %s265 = scalar_lea.sflag [#allocation6], %s264
        %s266 = sand.u32 %s141, 1
        %s267 = smul.addr %s266, 8
        %s268 = scalar_lea.vmem [#allocation10], %s267
        %v270 = vld [vmem:[%s234] sm:$0xff]
        %v271 = vpack.c.bf16 %v270, %v270
        %v272 = vld [vmem:[#allocation7] sm:$0xf]
        %v273 = vld [vmem:[#allocation7 + $0x4] sm:$0xf]
        %v274 = vld [vmem:[#allocation7 + $0x8] sm:$0xf]
        %v275 = vld [vmem:[#allocation7 + $0xc] sm:$0xf]
        %v276 = vld [vmem:[%s2] sm:$0x1]
        %v278 = vlaneseq
        %v279 = vshrl.u32 %v278, 7
        %v280 = vsub.s32 0, %v279
        %v281 = vrot.slane %v276, %v280
        %v287 = vunpack.c.l.b16 %v272
        %v288 = vunpack.c.l.b16 %v273
        %v289 = vunpack.c.l.b16 %v274
        %v290 = vunpack.c.l.b16 %v275
        %v291 = vpack.c.b16 %v288, %v287
        %v292 = vpack.c.b16 %v290, %v289
        %vm295 = vcmask 261120
        %v297 = vsel %vm295, %v271, 0
        %299 = vmatprep.subr.bf16.mxu0 0
        %300 = vmatpush1.bf16.msra.mxu0 0
        %301 = vmatprep.subr.bf16.mxu0 0
        %302 = vmatpush1.bf16.msra.mxu0 0
        %303 = vmatprep.subr.bf16.mxu0 0
        %304 = vmatpush1.bf16.msra.mxu0 0
        %305 = vmatprep.subr.bf16.mxu0 0
        %306 = vmatpush1.bf16.msra.mxu0 0
        %307 = vmatprep.subr.bf16.mxu0 0
        %308 = vmatpush1.bf16.msra.mxu0 0
        %309 = vmatprep.subr.bf16.mxu0 0
        %310 = vmatpush1.bf16.msra.mxu0 0
        %311 = vmatprep.subr.bf16.mxu0 0
        %312 = vmatpush1.bf16.msra.mxu0 %v292
        %313 = vmatprep.subr.bf16.mxu0 0
        %314 = vmatpush1.bf16.msra.mxu0 %v291
        %315 = vmatprep.subr.bf16.mxu0 0
        %316 = vmatpush2.bf16.msra.mxu0 0
        %317 = vmatprep.subr.bf16.mxu0 0
        %318 = vmatpush2.bf16.msra.mxu0 0
        %319 = vmatprep.subr.bf16.mxu0 0
        %320 = vmatpush2.bf16.msra.mxu0 0
        %321 = vmatprep.subr.bf16.mxu0 0
        %322 = vmatpush2.bf16.msra.mxu0 0
        %323 = vmatprep.subr.bf16.mxu0 0
        %324 = vmatpush2.bf16.msra.mxu0 0
        %325 = vmatprep.subr.bf16.mxu0 0
        %326 = vmatpush2.bf16.msra.mxu0 0
        %327 = vmatprep.subr.bf16.mxu0 0
        %328 = vmatpush2.bf16.msra.mxu0 0
        %329 = vmatprep.subr.bf16.mxu0 0
        %330 = vmatpush2.bf16.msra.mxu0 0
        %331 = vmatprep.mubr.bf16.mxu0 0
        %332 = vmatmul.mubr.bf16.gmra.mxu0 %v297
        %v333 = vpop.f32.mrf.mxu0
        %v334 = vadd.f32 %v281, %v333
        %v335 = vpop.f32.mrf.mxu0
        %v336 = vpop.f32.mrf.mxu0
        %v337 = vpop.f32.mrf.mxu0
        %338 = vdwg.mxu0
        %v339 = vpack.c.bf16 %v334, %v334
        %vm340 = vcmask 781312
        %341 = vst.msk [vmem:[#allocation2] sm:$0xf] %vm340, %v339
        %v342 = vld [vmem:[#allocation2] sm:$0xf]
        %v344 = vunpack.c.l.b16 %v342
        %v345 = vpack.c.b16 %v344, %v344
        %346 = vrot.lane.b32.xlu0 %v345, 96
        %v347 = vpop.permute.xlu0 %346
        %vm348 = vcmask 64512
        %v350 = vsel %vm348, %v342, 0
        %v353 = vsel %vm348, %v347, 0
        %355 = vmatprep.subr.bf16.mxu0 0
        %356 = vmatpush1.bf16.xpose.msra.mxu0 0
        %357 = vmatprep.subr.bf16.mxu0 0
        %358 = vmatpush1.bf16.xpose.msra.mxu0 0
        %359 = vmatprep.subr.bf16.mxu0 0
        %360 = vmatpush1.bf16.xpose.msra.mxu0 0
        %361 = vmatprep.subr.bf16.mxu0 0
        %362 = vmatpush1.bf16.xpose.msra.mxu0 0
        %363 = vmatprep.subr.bf16.mxu0 0
        %364 = vmatpush1.bf16.xpose.msra.mxu0 0
        %365 = vmatprep.subr.bf16.mxu0 0
        %366 = vmatpush1.bf16.xpose.msra.mxu0 0
        %367 = vmatprep.subr.bf16.mxu0 0
        %368 = vmatpush1.bf16.xpose.msra.mxu0 0
        %369 = vmatprep.subr.bf16.mxu0 0
        %370 = vmatpush1.bf16.xpose.msra.mxu0 %v353
        %371 = vmatprep.subr.bf16.mxu0 0
        %372 = vmatpush2.bf16.xpose.msra.mxu0 0
        %373 = vmatprep.subr.bf16.mxu0 0
        %374 = vmatpush2.bf16.xpose.msra.mxu0 0
        %375 = vmatprep.subr.bf16.mxu0 0
        %376 = vmatpush2.bf16.xpose.msra.mxu0 0
        %377 = vmatprep.subr.bf16.mxu0 0
        %378 = vmatpush2.bf16.xpose.msra.mxu0 0
        %379 = vmatprep.subr.bf16.mxu0 0
        %380 = vmatpush2.bf16.xpose.msra.mxu0 0
        %381 = vmatprep.subr.bf16.mxu0 0
        %382 = vmatpush2.bf16.xpose.msra.mxu0 0
        %383 = vmatprep.subr.bf16.mxu0 0
        %384 = vmatpush2.bf16.xpose.msra.mxu0 0
        %385 = vmatprep.subr.bf16.mxu0 0
        %386 = vmatpush2.bf16.xpose.msra.mxu0 0
        %387 = vmatprep.mubr.bf16.mxu0 0
        %388 = vmatmul.mubr.bf16.gmra.mxu0 %v350
        %v389 = vpop.f32.mrf.mxu0
        %v390 = vadd.f32 0.0, %v389
        %v391 = vpop.f32.mrf.mxu0
        %v392 = vpop.f32.mrf.mxu0
        %v393 = vpop.f32.mrf.mxu0
        %394 = vdwg.mxu0
        %v395 = vsel %vm348, %v390, -inf
        %396 = vmax.xlane.f32.xlu0 %v395
        %v397 = vpop.xlane.xlu0 %396
        %v398 = vsub.f32 %v390, %v397
        %v399 = vmul.f32 %v398, 1.442695
        %v400 = vpow.pop %v399
        %v401 = vsel %vm348, %v400, 0.0
        %402 = vadd.xlane.f32.xlu0 %v401
        %v403 = vpop.xlane.xlu0 %402
        %v404 = vpack.c.bf16 %v400, %v400
        %405 = vrot.lane.b32.xlu0 %v345, 64
        %v406 = vpop.permute.xlu0 %405
        %v408 = vsel %vm348, %v404, 0
        %vm410 = vcmask 1043456
        %v412 = vsel %vm410, %v406, 0
        %414 = vmatprep.subr.bf16.mxu0 0
        %415 = vmatpush1.bf16.msra.mxu0 0
        %416 = vmatprep.subr.bf16.mxu0 0
        %417 = vmatpush1.bf16.msra.mxu0 0
        %418 = vmatprep.subr.bf16.mxu0 0
        %419 = vmatpush1.bf16.msra.mxu0 0
        %420 = vmatprep.subr.bf16.mxu0 0
        %421 = vmatpush1.bf16.msra.mxu0 0
        %422 = vmatprep.subr.bf16.mxu0 0
        %423 = vmatpush1.bf16.msra.mxu0 0
        %424 = vmatprep.subr.bf16.mxu0 0
        %425 = vmatpush1.bf16.msra.mxu0 0
        %426 = vmatprep.subr.bf16.mxu0 0
        %427 = vmatpush1.bf16.msra.mxu0 0
        %428 = vmatprep.subr.bf16.mxu0 0
        %429 = vmatpush1.bf16.msra.mxu0 %v412
        %430 = vmatprep.subr.bf16.mxu0 0
        %431 = vmatpush2.bf16.msra.mxu0 0
        %432 = vmatprep.subr.bf16.mxu0 0
        %433 = vmatpush2.bf16.msra.mxu0 0
        %434 = vmatprep.subr.bf16.mxu0 0
        %435 = vmatpush2.bf16.msra.mxu0 0
        %436 = vmatprep.subr.bf16.mxu0 0
        %437 = vmatpush2.bf16.msra.mxu0 0
        %438 = vmatprep.subr.bf16.mxu0 0
        %439 = vmatpush2.bf16.msra.mxu0 0
        %440 = vmatprep.subr.bf16.mxu0 0
        %441 = vmatpush2.bf16.msra.mxu0 0
        %442 = vmatprep.subr.bf16.mxu0 0
        %443 = vmatpush2.bf16.msra.mxu0 0
        %444 = vmatprep.subr.bf16.mxu0 0
        %445 = vmatpush2.bf16.msra.mxu0 0
        %446 = vmatprep.mubr.bf16.mxu0 0
        %447 = vmatmul.mubr.bf16.gmra.mxu0 %v408
        %v448 = vpop.f32.mrf.mxu0
        %v449 = vadd.f32 0.0, %v448
        %v450 = vpop.f32.mrf.mxu0
        %v451 = vpop.f32.mrf.mxu0
        %v452 = vpop.f32.mrf.mxu0
        %453 = vdwg.mxu0
        %v454 = vrcp.pop %v403
        %v455 = vmul.f32 %v449, %v454
        %v456 = vpack.c.bf16 %v455, %v455
        %457 = vrot.lane.b32.xlu0 %v345, 120
        %v458 = vpop.permute.xlu0 %457
        %459 = vrot.lane.b32.xlu0 %v345, 88
        %v460 = vpop.permute.xlu0 %459
        %v462 = vsel %vm348, %v458, 0
        %v465 = vsel %vm348, %v460, 0
        %467 = vmatprep.subr.bf16.mxu0 0
        %468 = vmatpush1.bf16.xpose.msra.mxu0 0
        %469 = vmatprep.subr.bf16.mxu0 0
        %470 = vmatpush1.bf16.xpose.msra.mxu0 0
        %471 = vmatprep.subr.bf16.mxu0 0
        %472 = vmatpush1.bf16.xpose.msra.mxu0 0
        %473 = vmatprep.subr.bf16.mxu0 0
        %474 = vmatpush1.bf16.xpose.msra.mxu0 0
        %475 = vmatprep.subr.bf16.mxu0 0
        %476 = vmatpush1.bf16.xpose.msra.mxu0 0
        %477 = vmatprep.subr.bf16.mxu0 0
        %478 = vmatpush1.bf16.xpose.msra.mxu0 0
        %479 = vmatprep.subr.bf16.mxu0 0
        %480 = vmatpush1.bf16.xpose.msra.mxu0 0
        %481 = vmatprep.subr.bf16.mxu0 0
        %482 = vmatpush1.bf16.xpose.msra.mxu0 %v465
        %483 = vmatprep.subr.bf16.mxu0 0
        %484 = vmatpush2.bf16.xpose.msra.mxu0 0
        %485 = vmatprep.subr.bf16.mxu0 0
        %486 = vmatpush2.bf16.xpose.msra.mxu0 0
        %487 = vmatprep.subr.bf16.mxu0 0
        %488 = vmatpush2.bf16.xpose.msra.mxu0 0
        %489 = vmatprep.subr.bf16.mxu0 0
        %490 = vmatpush2.bf16.xpose.msra.mxu0 0
        %491 = vmatprep.subr.bf16.mxu0 0
        %492 = vmatpush2.bf16.xpose.msra.mxu0 0
        %493 = vmatprep.subr.bf16.mxu0 0
        %494 = vmatpush2.bf16.xpose.msra.mxu0 0
        %495 = vmatprep.subr.bf16.mxu0 0
        %496 = vmatpush2.bf16.xpose.msra.mxu0 0
        %497 = vmatprep.subr.bf16.mxu0 0
        %498 = vmatpush2.bf16.xpose.msra.mxu0 0
        %499 = vmatprep.mubr.bf16.mxu0 0
        %500 = vmatmul.mubr.bf16.gmra.mxu0 %v462
        %v501 = vpop.f32.mrf.mxu0
        %v502 = vadd.f32 0.0, %v501
        %v503 = vpop.f32.mrf.mxu0
        %v504 = vpop.f32.mrf.mxu0
        %v505 = vpop.f32.mrf.mxu0
        %506 = vdwg.mxu0
        %v507 = vsel %vm348, %v502, -inf
        %508 = vmax.xlane.f32.xlu0 %v507
        %v509 = vpop.xlane.xlu0 %508
        %v510 = vsub.f32 %v502, %v509
        %v511 = vmul.f32 %v510, 1.442695
        %v512 = vpow.pop %v511
        %v513 = vsel %vm348, %v512, 0.0
        %514 = vadd.xlane.f32.xlu0 %v513
        %v515 = vpop.xlane.xlu0 %514
        %v516 = vpack.c.bf16 %v512, %v512
        %517 = vrot.lane.b32.xlu0 %v345, 56
        %v518 = vpop.permute.xlu0 %517
        %v520 = vsel %vm348, %v516, 0
        %v523 = vsel %vm410, %v518, 0
        %525 = vmatprep.subr.bf16.mxu0 0
        %526 = vmatpush1.bf16.msra.mxu0 0
        %527 = vmatprep.subr.bf16.mxu0 0
        %528 = vmatpush1.bf16.msra.mxu0 0
        %529 = vmatprep.subr.bf16.mxu0 0
        %530 = vmatpush1.bf16.msra.mxu0 0
        %531 = vmatprep.subr.bf16.mxu0 0
        %532 = vmatpush1.bf16.msra.mxu0 0
        %533 = vmatprep.subr.bf16.mxu0 0
        %534 = vmatpush1.bf16.msra.mxu0 0
        %535 = vmatprep.subr.bf16.mxu0 0
        %536 = vmatpush1.bf16.msra.mxu0 0
        %537 = vmatprep.subr.bf16.mxu0 0
        %538 = vmatpush1.bf16.msra.mxu0 0
        %539 = vmatprep.subr.bf16.mxu0 0
        %540 = vmatpush1.bf16.msra.mxu0 %v523
        %541 = vmatprep.subr.bf16.mxu0 0
        %542 = vmatpush2.bf16.msra.mxu0 0
        %543 = vmatprep.subr.bf16.mxu0 0
        %544 = vmatpush2.bf16.msra.mxu0 0
        %545 = vmatprep.subr.bf16.mxu0 0
        %546 = vmatpush2.bf16.msra.mxu0 0
        %547 = vmatprep.subr.bf16.mxu0 0
        %548 = vmatpush2.bf16.msra.mxu0 0
        %549 = vmatprep.subr.bf16.mxu0 0
        %550 = vmatpush2.bf16.msra.mxu0 0
        %551 = vmatprep.subr.bf16.mxu0 0
        %552 = vmatpush2.bf16.msra.mxu0 0
        %553 = vmatprep.subr.bf16.mxu0 0
        %554 = vmatpush2.bf16.msra.mxu0 0
        %555 = vmatprep.subr.bf16.mxu0 0
        %556 = vmatpush2.bf16.msra.mxu0 0
        %557 = vmatprep.mubr.bf16.mxu0 0
        %558 = vmatmul.mubr.bf16.gmra.mxu0 %v520
        %v559 = vpop.f32.mrf.mxu0
        %v560 = vadd.f32 0.0, %v559
        %v561 = vpop.f32.mrf.mxu0
        %v562 = vpop.f32.mrf.mxu0
        %v563 = vpop.f32.mrf.mxu0
        %564 = vdwg.mxu0
        %v565 = vrcp.pop %v515
        %v566 = vmul.f32 %v560, %v565
        %v567 = vpack.c.bf16 %v566, %v566
        %568 = vrot.lane.b32.xlu0 %v345, 112
        %v569 = vpop.permute.xlu0 %568
        %570 = vrot.lane.b32.xlu0 %v345, 80
        %v571 = vpop.permute.xlu0 %570
        %v573 = vsel %vm348, %v569, 0
        %v576 = vsel %vm348, %v571, 0
        %578 = vmatprep.subr.bf16.mxu0 0
        %579 = vmatpush1.bf16.xpose.msra.mxu0 0
        %580 = vmatprep.subr.bf16.mxu0 0
        %581 = vmatpush1.bf16.xpose.msra.mxu0 0
        %582 = vmatprep.subr.bf16.mxu0 0
        %583 = vmatpush1.bf16.xpose.msra.mxu0 0
        %584 = vmatprep.subr.bf16.mxu0 0
        %585 = vmatpush1.bf16.xpose.msra.mxu0 0
        %586 = vmatprep.subr.bf16.mxu0 0
        %587 = vmatpush1.bf16.xpose.msra.mxu0 0
        %588 = vmatprep.subr.bf16.mxu0 0
        %589 = vmatpush1.bf16.xpose.msra.mxu0 0
        %590 = vmatprep.subr.bf16.mxu0 0
        %591 = vmatpush1.bf16.xpose.msra.mxu0 0
        %592 = vmatprep.subr.bf16.mxu0 0
        %593 = vmatpush1.bf16.xpose.msra.mxu0 %v576
        %594 = vmatprep.subr.bf16.mxu0 0
        %595 = vmatpush2.bf16.xpose.msra.mxu0 0
        %596 = vmatprep.subr.bf16.mxu0 0
        %597 = vmatpush2.bf16.xpose.msra.mxu0 0
        %598 = vmatprep.subr.bf16.mxu0 0
        %599 = vmatpush2.bf16.xpose.msra.mxu0 0
        %600 = vmatprep.subr.bf16.mxu0 0
        %601 = vmatpush2.bf16.xpose.msra.mxu0 0
        %602 = vmatprep.subr.bf16.mxu0 0
        %603 = vmatpush2.bf16.xpose.msra.mxu0 0
        %604 = vmatprep.subr.bf16.mxu0 0
        %605 = vmatpush2.bf16.xpose.msra.mxu0 0
        %606 = vmatprep.subr.bf16.mxu0 0
        %607 = vmatpush2.bf16.xpose.msra.mxu0 0
        %608 = vmatprep.subr.bf16.mxu0 0
        %609 = vmatpush2.bf16.xpose.msra.mxu0 0
        %610 = vmatprep.mubr.bf16.mxu0 0
        %611 = vmatmul.mubr.bf16.gmra.mxu0 %v573
        %v612 = vpop.f32.mrf.mxu0
        %v613 = vadd.f32 0.0, %v612
        %v614 = vpop.f32.mrf.mxu0
        %v615 = vpop.f32.mrf.mxu0
        %v616 = vpop.f32.mrf.mxu0
        %617 = vdwg.mxu0
        %v618 = vsel %vm348, %v613, -inf
        %619 = vmax.xlane.f32.xlu0 %v618
        %v620 = vpop.xlane.xlu0 %619
        %v621 = vsub.f32 %v613, %v620
        %v622 = vmul.f32 %v621, 1.442695
        %v623 = vpow.pop %v622
        %v624 = vsel %vm348, %v623, 0.0
        %625 = vadd.xlane.f32.xlu0 %v624
        %v626 = vpop.xlane.xlu0 %625
        %v627 = vpack.c.bf16 %v623, %v623
        %628 = vrot.lane.b32.xlu0 %v345, 48
        %v629 = vpop.permute.xlu0 %628
        %v631 = vsel %vm348, %v627, 0
        %v634 = vsel %vm410, %v629, 0
        %636 = vmatprep.subr.bf16.mxu0 0
        %637 = vmatpush1.bf16.msra.mxu0 0
        %638 = vmatprep.subr.bf16.mxu0 0
        %639 = vmatpush1.bf16.msra.mxu0 0
        %640 = vmatprep.subr.bf16.mxu0 0
        %641 = vmatpush1.bf16.msra.mxu0 0
        %642 = vmatprep.subr.bf16.mxu0 0
        %643 = vmatpush1.bf16.msra.mxu0 0
        %644 = vmatprep.subr.bf16.mxu0 0
        %645 = vmatpush1.bf16.msra.mxu0 0
        %646 = vmatprep.subr.bf16.mxu0 0
        %647 = vmatpush1.bf16.msra.mxu0 0
        %648 = vmatprep.subr.bf16.mxu0 0
        %649 = vmatpush1.bf16.msra.mxu0 0
        %650 = vmatprep.subr.bf16.mxu0 0
        %651 = vmatpush1.bf16.msra.mxu0 %v634
        %652 = vmatprep.subr.bf16.mxu0 0
        %653 = vmatpush2.bf16.msra.mxu0 0
        %654 = vmatprep.subr.bf16.mxu0 0
        %655 = vmatpush2.bf16.msra.mxu0 0
        %656 = vmatprep.subr.bf16.mxu0 0
        %657 = vmatpush2.bf16.msra.mxu0 0
        %658 = vmatprep.subr.bf16.mxu0 0
        %659 = vmatpush2.bf16.msra.mxu0 0
        %660 = vmatprep.subr.bf16.mxu0 0
        %661 = vmatpush2.bf16.msra.mxu0 0
        %662 = vmatprep.subr.bf16.mxu0 0
        %663 = vmatpush2.bf16.msra.mxu0 0
        %664 = vmatprep.subr.bf16.mxu0 0
        %665 = vmatpush2.bf16.msra.mxu0 0
        %666 = vmatprep.subr.bf16.mxu0 0
        %667 = vmatpush2.bf16.msra.mxu0 0
        %668 = vmatprep.mubr.bf16.mxu0 0
        %669 = vmatmul.mubr.bf16.gmra.mxu0 %v631
        %v670 = vpop.f32.mrf.mxu0
        %v671 = vadd.f32 0.0, %v670
        %v672 = vpop.f32.mrf.mxu0
        %v673 = vpop.f32.mrf.mxu0
        %v674 = vpop.f32.mrf.mxu0
        %675 = vdwg.mxu0
        %v676 = vrcp.pop %v626
        %v677 = vmul.f32 %v671, %v676
        %v678 = vpack.c.bf16 %v677, %v677
        %679 = vrot.lane.b32.xlu0 %v345, 104
        %v680 = vpop.permute.xlu0 %679
        %681 = vrot.lane.b32.xlu0 %v345, 72
        %v682 = vpop.permute.xlu0 %681
        %v684 = vsel %vm348, %v680, 0
        %v687 = vsel %vm348, %v682, 0
        %689 = vmatprep.subr.bf16.mxu0 0
        %690 = vmatpush1.bf16.xpose.msra.mxu0 0
        %691 = vmatprep.subr.bf16.mxu0 0
        %692 = vmatpush1.bf16.xpose.msra.mxu0 0
        %693 = vmatprep.subr.bf16.mxu0 0
        %694 = vmatpush1.bf16.xpose.msra.mxu0 0
        %695 = vmatprep.subr.bf16.mxu0 0
        %696 = vmatpush1.bf16.xpose.msra.mxu0 0
        %697 = vmatprep.subr.bf16.mxu0 0
        %698 = vmatpush1.bf16.xpose.msra.mxu0 0
        %699 = vmatprep.subr.bf16.mxu0 0
        %700 = vmatpush1.bf16.xpose.msra.mxu0 0
        %701 = vmatprep.subr.bf16.mxu0 0
        %702 = vmatpush1.bf16.xpose.msra.mxu0 0
        %703 = vmatprep.subr.bf16.mxu0 0
        %704 = vmatpush1.bf16.xpose.msra.mxu0 %v687
        %705 = vmatprep.subr.bf16.mxu0 0
        %706 = vmatpush2.bf16.xpose.msra.mxu0 0
        %707 = vmatprep.subr.bf16.mxu0 0
        %708 = vmatpush2.bf16.xpose.msra.mxu0 0
        %709 = vmatprep.subr.bf16.mxu0 0
        %710 = vmatpush2.bf16.xpose.msra.mxu0 0
        %711 = vmatprep.subr.bf16.mxu0 0
        %712 = vmatpush2.bf16.xpose.msra.mxu0 0
        %713 = vmatprep.subr.bf16.mxu0 0
        %714 = vmatpush2.bf16.xpose.msra.mxu0 0
        %715 = vmatprep.subr.bf16.mxu0 0
        %716 = vmatpush2.bf16.xpose.msra.mxu0 0
        %717 = vmatprep.subr.bf16.mxu0 0
        %718 = vmatpush2.bf16.xpose.msra.mxu0 0
        %719 = vmatprep.subr.bf16.mxu0 0
        %720 = vmatpush2.bf16.xpose.msra.mxu0 0
        %721 = vmatprep.mubr.bf16.mxu0 0
        %722 = vmatmul.mubr.bf16.gmra.mxu0 %v684
        %v723 = vpop.f32.mrf.mxu0
        %v724 = vadd.f32 0.0, %v723
        %v725 = vpop.f32.mrf.mxu0
        %v726 = vpop.f32.mrf.mxu0
        %v727 = vpop.f32.mrf.mxu0
        %728 = vdwg.mxu0
        %v729 = vsel %vm348, %v724, -inf
        %730 = vmax.xlane.f32.xlu0 %v729
        %v731 = vpop.xlane.xlu0 %730
        %v732 = vsub.f32 %v724, %v731
        %v733 = vmul.f32 %v732, 1.442695
        %v734 = vpow.pop %v733
        %v735 = vsel %vm348, %v734, 0.0
        %736 = vadd.xlane.f32.xlu0 %v735
        %v737 = vpop.xlane.xlu0 %736
        %v738 = vpack.c.bf16 %v734, %v734
        %739 = vrot.lane.b32.xlu0 %v345, 40
        %v740 = vpop.permute.xlu0 %739
        %v742 = vsel %vm348, %v738, 0
        %v745 = vsel %vm410, %v740, 0
        %747 = vmatprep.subr.bf16.mxu0 0
        %748 = vmatpush1.bf16.msra.mxu0 0
        %749 = vmatprep.subr.bf16.mxu0 0
        %750 = vmatpush1.bf16.msra.mxu0 0
        %751 = vmatprep.subr.bf16.mxu0 0
        %752 = vmatpush1.bf16.msra.mxu0 0
        %753 = vmatprep.subr.bf16.mxu0 0
        %754 = vmatpush1.bf16.msra.mxu0 0
        %755 = vmatprep.subr.bf16.mxu0 0
        %756 = vmatpush1.bf16.msra.mxu0 0
        %757 = vmatprep.subr.bf16.mxu0 0
        %758 = vmatpush1.bf16.msra.mxu0 0
        %759 = vmatprep.subr.bf16.mxu0 0
        %760 = vmatpush1.bf16.msra.mxu0 0
        %761 = vmatprep.subr.bf16.mxu0 0
        %762 = vmatpush1.bf16.msra.mxu0 %v745
        %763 = vmatprep.subr.bf16.mxu0 0
        %764 = vmatpush2.bf16.msra.mxu0 0
        %765 = vmatprep.subr.bf16.mxu0 0
        %766 = vmatpush2.bf16.msra.mxu0 0
        %767 = vmatprep.subr.bf16.mxu0 0
        %768 = vmatpush2.bf16.msra.mxu0 0
        %769 = vmatprep.subr.bf16.mxu0 0
        %770 = vmatpush2.bf16.msra.mxu0 0
        %771 = vmatprep.subr.bf16.mxu0 0
        %772 = vmatpush2.bf16.msra.mxu0 0
        %773 = vmatprep.subr.bf16.mxu0 0
        %774 = vmatpush2.bf16.msra.mxu0 0
        %775 = vmatprep.subr.bf16.mxu0 0
        %776 = vmatpush2.bf16.msra.mxu0 0
        %777 = vmatprep.subr.bf16.mxu0 0
        %778 = vmatpush2.bf16.msra.mxu0 0
        %779 = vmatprep.mubr.bf16.mxu0 0
        %780 = vmatmul.mubr.bf16.gmra.mxu0 %v742
        %v781 = vpop.f32.mrf.mxu0
        %v782 = vadd.f32 0.0, %v781
        %v783 = vpop.f32.mrf.mxu0
        %v784 = vpop.f32.mrf.mxu0
        %v785 = vpop.f32.mrf.mxu0
        %786 = vdwg.mxu0
        %v787 = vrcp.pop %v737
        %v788 = vmul.f32 %v782, %v787
        %v789 = vpack.c.bf16 %v788, %v788
        %791 = vrot.lane.b32.xlu0 %v567, 8
        %v792 = vpop.permute.xlu0 %791
        %794 = vrot.lane.b32.xlu0 %v678, 16
        %v795 = vpop.permute.xlu0 %794
        %797 = vrot.lane.b32.xlu0 %v789, 24
        %v798 = vpop.permute.xlu0 %797
        %v801 = vsel %vm348, %v456, %v792
        %vm802 = vcmask 130048
        %v804 = vsel %vm802, %v801, %v795
        %vm805 = vcmask 195584
        %v807 = vsel %vm805, %v804, %v798
        %vm809 = vcmask 257024
        %810 = vst.msk [vmem:[#allocation3] sm:$0xf] %vm809, %v807
        %v811 = vld [vmem:[#allocation3] sm:$0xf]
        %v812 = vld [vmem:[#allocation9] sm:$0xf]
        %v813 = vld [vmem:[#allocation9 + $0x4] sm:$0xf]
        %v814 = vld [vmem:[#allocation9 + $0x8] sm:$0xf]
        %v815 = vld [vmem:[#allocation9 + $0xc] sm:$0xf]
        %v816 = vld [vmem:[%s4] sm:$0x1]
        %v818 = vlaneseq
        %v819 = vshrl.u32 %v818, 7
        %v820 = vsub.s32 0, %v819
        %v821 = vrot.slane %v816, %v820
        %v827 = vunpack.c.l.b16 %v812
        %v828 = vunpack.c.l.b16 %v813
        %v829 = vunpack.c.l.b16 %v814
        %v830 = vunpack.c.l.b16 %v815
        %v831 = vpack.c.b16 %v828, %v827
        %v832 = vpack.c.b16 %v830, %v829
        %v836 = vsel %vm295, %v811, 0
        %838 = vmatprep.subr.bf16.mxu0 0
        %839 = vmatpush1.bf16.msra.mxu0 0
        %840 = vmatprep.subr.bf16.mxu0 0
        %841 = vmatpush1.bf16.msra.mxu0 0
        %842 = vmatprep.subr.bf16.mxu0 0
        %843 = vmatpush1.bf16.msra.mxu0 0
        %844 = vmatprep.subr.bf16.mxu0 0
        %845 = vmatpush1.bf16.msra.mxu0 0
        %846 = vmatprep.subr.bf16.mxu0 0
        %847 = vmatpush1.bf16.msra.mxu0 0
        %848 = vmatprep.subr.bf16.mxu0 0
        %849 = vmatpush1.bf16.msra.mxu0 0
        %850 = vmatprep.subr.bf16.mxu0 0
        %851 = vmatpush1.bf16.msra.mxu0 %v832
        %852 = vmatprep.subr.bf16.mxu0 0
        %853 = vmatpush1.bf16.msra.mxu0 %v831
        %854 = vmatprep.subr.bf16.mxu0 0
        %855 = vmatpush2.bf16.msra.mxu0 0
        %856 = vmatprep.subr.bf16.mxu0 0
        %857 = vmatpush2.bf16.msra.mxu0 0
        %858 = vmatprep.subr.bf16.mxu0 0
        %859 = vmatpush2.bf16.msra.mxu0 0
        %860 = vmatprep.subr.bf16.mxu0 0
        %861 = vmatpush2.bf16.msra.mxu0 0
        %862 = vmatprep.subr.bf16.mxu0 0
        %863 = vmatpush2.bf16.msra.mxu0 0
        %864 = vmatprep.subr.bf16.mxu0 0
        %865 = vmatpush2.bf16.msra.mxu0 0
        %866 = vmatprep.subr.bf16.mxu0 0
        %867 = vmatpush2.bf16.msra.mxu0 0
        %868 = vmatprep.subr.bf16.mxu0 0
        %869 = vmatpush2.bf16.msra.mxu0 0
        %870 = vmatprep.mubr.bf16.mxu0 0
        %871 = vmatmul.mubr.bf16.gmra.mxu0 %v836
        %v872 = vpop.f32.mrf.mxu0
        %v873 = vadd.f32 %v821, %v872
        %v874 = vpop.f32.mrf.mxu0
        %v875 = vpop.f32.mrf.mxu0
        %v876 = vpop.f32.mrf.mxu0
        %877 = vdwg.mxu0
        %878 = vst.msk [vmem:[%s268] sm:$0xff] %vm295, %v873
        %s879 = sand.u32 %s141, 1
        %s880 = scalar_lea.sflag [#allocation6], %s879
        %s881 = sand.u32 %s141, 1
        %s882 = smul.addr %s881, 8
        %s883 = scalar_lea.vmem [#allocation10], %s882
        // Predicated region
        $region53: #{tpu_custom_call.1} parent=39 // pred_check
          %p884 = pneg %p151
        $region54: #{tpu_custom_call.1} parent=39 // pred_check_branch
          %886 = sbr.rel (%p884) target = $region56
        $region55: #{tpu_custom_call.1} parent=39 // pred_region
          %s888 = ssub.s32 128, 128
          %889 = vsyncadd %s880, %s888
          %s890 = smul.addr %s23, 128
          %s891 = scalar_lea.hbm %s5, %s890
          %s893 = sshll.u32 %s883, 4
          %s894 = int_to_ptr.vmem [resolvable:$true] %s893
          %896 = dma.vmem_to_hbm [thread:$0]  %s894, 128, %s891, %s880
        $region56: #{tpu_custom_call.1} parent=39 // pred_fallthru
          _
      $region40: #{tpu_custom_call.1} parent=5 // pred_fallthru
        _
      %p897 = scmp.le.s32.totalorder 2, %s18
      // Predicated region
      $region57: #{tpu_custom_call.1} parent=5 // pred_check
        %p898 = pneg %p897
      $region58: #{tpu_custom_call.1} parent=5 // pred_check_branch
        %900 = sbr.rel (%p898) target = $region60
      $region59: #{tpu_custom_call.1} parent=5 // pred_region
        %s901 = ssub.s32 %s18, 2
        // Predicated region
        $region61: #{tpu_custom_call.1} parent=59 // pred_check
          %p902 = pneg %p157
        $region62: #{tpu_custom_call.1} parent=59 // pred_check_branch
          %904 = sbr.rel (%p902) target = $region64
        $region63: #{tpu_custom_call.1} parent=59 // pred_region
          %s905 = sand.u32 %s142, 1
          %s906 = scalar_lea.sflag [#allocation6], %s905
          %s907 = sand.u32 %s142, 1
          %s908 = smul.addr %s907, 8
          %s909 = scalar_lea.vmem [#allocation10], %s908
          %910 = dma.done %s906, 128
        $region64: #{tpu_custom_call.1} parent=59 // pred_fallthru
          _
      $region60: #{tpu_custom_call.1} parent=5 // pred_fallthru
        _
    $region6: #{tpu_custom_call.1} parent=1 // loop_footer
      %s22 = sadd.s32 1, %s18
    $region7: #{tpu_custom_call.1} parent=1 // loop_footer_branch
      %17 = sbr.rel target = $region3
    $region8: #{tpu_custom_call.1} parent=1 // loop_exit
      _
    %911 = vsyncpa [#allocation5], 1
    %s912 = scalar_lea.sflag [#allocation5], 1
    %913 = vsyncpa %s912, 1
    %914 = vsyncpa [#allocation8], 1
    %915 = vsyncpa [#allocation6], 1
    %s916 = scalar_lea.sflag [#allocation6], 1
    %917 = vsyncpa %s916, 1

</llo_original>
